<compile_context>
chip_gen: v7x
topology: tpu7x:2x2x1
jax: 0.10.0
libtpu: 0.0.40
codegen_flags: <defaults>
</compile_context>

<pallas_src>
import jax
import jax.numpy as jnp
import numpy as np
from jax import lax
from jax.experimental import pallas as pl
from jax.experimental.pallas import tpu as pltpu


# ----------------------------------- Wrapper ----------------------------------------
def attenconv_forward(x_nchw, params):
    """x_nchw: (B, Cin, H, W) float32. Returns (B, Cout, H, W)."""
    w_conv, b_conv, w1, b1, w2, b2 = params
    B, Cin, H, W = x_nchw.shape
    Cout = w_conv.shape[-1]
    S = H * W                      # output spatial (lane dim, multiple of 128 here)
    L = (H + 2) * W + 2            # H-halo-padded, flattened, +1 guard element each side

    # H-halo pad, flatten spatial, add 1 zero guard element front/back.
    xh = jnp.pad(x_nchw, ((0, 0), (0, 0), (1, 1), (0, 0)))            # (B, Cin, H+2, W)
    xf = jnp.pad(xh.reshape(B, Cin, (H + 2) * W), ((0, 0), (0, 0), (1, 1)))  # (B, Cin, L)

    # One-off weight re-layouts (tiny).
    #   w_mat[co, (ky*3+kx)*Cin + ci] = w_conv[ky, kx, ci, co]
    w_mat = jnp.transpose(w_conv, (3, 0, 1, 2)).reshape(Cout, 9 * Cin)
    bc = b_conv.reshape(Cout, 1)
    w2t = w2.T                                                         # (out, in)
    b2c = b2.reshape(Cout, 1)

    def kernel(x_ref, w_ref, bc_ref, w1_ref, b1_ref, w2t_ref, b2c_ref, o_ref):
        # x_ref:  (1, Cin, L)   H-padded, flattened input for this batch element
        # w_ref:  (Cout, 9*Cin) 3x3 conv weights, taps folded into K
        # bc_ref: (Cout, 1)     conv bias (column)
        # w1_ref: (Cout, Cout)  first 1x1 conv, [in, out]
        # b1_ref: (1, Cout)
        # w2t_ref:(Cout, Cout)  second 1x1 conv, [out, in]
        # b2c_ref:(Cout, 1)
        # o_ref:  (1, Cout, S)  fused output (NCHW with spatial flattened)
        xflat = x_ref[0]                                           # (Cin, L)

        # Output-column index of each flattened spatial position (for edge taps).
        col = lax.broadcasted_iota(jnp.int32, (1, S), 1) % W
        left_edge = col == 0
        right_edge = col == (W - 1)

        # Build the (9*Cin, S) stacked patch: each tap is a contiguous lane slice.
        patches = []
        for ky in range(3):
            for kx in range(3):
                off = ky * W + kx
                p = xflat[:, off:off + S]                          # (Cin, S)
                if kx == 0:        # tap reads column x-1 -> invalid at x == 0
                    p = jnp.where(left_edge, 0.0, p)
                elif kx == 2:      # tap reads column x+1 -> invalid at x == W-1
                    p = jnp.where(right_edge, 0.0, p)
                patches.append(p)
        pat = jnp.concatenate(patches, axis=0)                     # (9*Cin, S)

        # 3x3 conv as ONE matmul, bias, ReLU  -> lane-dense (Cout, S) feature map.
        feat = jnp.dot(w_ref[...], pat, preferred_element_type=jnp.float32)
        feat = jnp.maximum(feat + bc_ref[...], 0.0)

        # Global average pool (over all H*W lanes).
        pooled = jnp.mean(feat, axis=1, keepdims=True)             # (Cout, 1)

        # Channel MLP on the VPU: broadcast-mul + reductions (no tiny matmuls).
        h = jnp.sum(w1_ref[...] * pooled, axis=0, keepdims=True) + b1_ref[...]   # (1, Cout)
        h = jnp.maximum(h, 0.0)
        a = jnp.sum(w2t_ref[...] * h, axis=1, keepdims=True) + b2c_ref[...]      # (Cout, 1)
        a = jax.nn.sigmoid(a)

        # Broadcast multiply over lanes and store (dense, unmasked stores).
        o_ref[0] = feat * a

    out_flat = pl.pallas_call(
        kernel,
        out_shape=jax.ShapeDtypeStruct((B, Cout, S), jnp.float32),
        grid=(B,),
        in_specs=[
            pl.BlockSpec((1, Cin, L), lambda b: (b, 0, 0)),
            pl.BlockSpec((Cout, 9 * Cin), lambda b: (0, 0)),
            pl.BlockSpec((Cout, 1), lambda b: (0, 0)),
            pl.BlockSpec((Cout, Cout), lambda b: (0, 0)),
            pl.BlockSpec((1, Cout), lambda b: (0, 0)),
            pl.BlockSpec((Cout, Cout), lambda b: (0, 0)),
            pl.BlockSpec((Cout, 1), lambda b: (0, 0)),
        ],
        out_specs=pl.BlockSpec((1, Cout, S), lambda b: (b, 0, 0)),
        compiler_params=pltpu.CompilerParams(dimension_semantics=("parallel",)),
    )(xf, w_mat, bc, w1, b1, w2t, b2c)

    return out_flat.reshape(B, Cout, H, W)                          # free reshape


# ------------------------------- Pure-JAX reference ---------------------------------
def attenconv_reference(x_nchw, params):
    w_conv, b_conv, w1, b1, w2, b2 = params
    x = jnp.transpose(x_nchw, (0, 2, 3, 1))
    feat = lax.conv_general_dilated(
        x, w_conv, window_strides=(1, 1), padding="SAME",
        dimension_numbers=("NHWC", "HWIO", "NHWC"))
    feat = jnp.maximum(feat + b_conv.reshape(1, 1, 1, -1), 0.0)
    pooled = feat.mean(axis=(1, 2))                   # (B, C)
    a = jnp.maximum(pooled @ w1 + b1, 0.0)
    a = jax.nn.sigmoid(a @ w2 + b2)
    out = feat * a[:, None, None, :]
    return jnp.transpose(out, (0, 3, 1, 2))


if __name__ == "__main__":
    # Small deterministic setup.
    B, Cin, Cout, H, W = 2, 4, 8, 16, 16
    key = jax.random.PRNGKey(0)
    kxk, kw, kb, k1w, k1b, k2w, k2b = jax.random.split(key, 7)

    x = jax.random.normal(kxk, (B, Cin, H, W), jnp.float32)

    # Parameters (deterministic). PyTorch layout mapping:
    #   nn.Conv2d(Cin, Cout, 3) weight [Cout, Cin, 3, 3] == w_conv.transpose(3, 2, 0, 1)
    #   1x1 convs weight [Cout, Cout, 1, 1] == w1.T / w2.T ; biases identical.
    w_conv = jax.random.normal(kw, (3, 3, Cin, Cout), jnp.float32) * 0.1
    b_conv = jax.random.normal(kb, (1, Cout), jnp.float32) * 0.1
    w1 = jax.random.normal(k1w, (Cout, Cout), jnp.float32) * 0.1
    b1 = jax.random.normal(k1b, (1, Cout), jnp.float32) * 0.1
    w2 = jax.random.normal(k2w, (Cout, Cout), jnp.float32) * 0.1
    b2 = jax.random.normal(k2b, (1, Cout), jnp.float32) * 0.1
    params = (w_conv, b_conv, w1, b1, w2, b2)

    out = jax.jit(attenconv_forward)(x, params)
    out = jax.block_until_ready(out)

    ref = jax.block_until_ready(attenconv_reference(x, params))
    np.testing.assert_allclose(np.asarray(out), np.asarray(ref), rtol=1e-5, atol=1e-5)

    print("KERNEL_OK")
</pallas_src>

<mosaic_0001>
module attributes {stable_mosaic.version = 11 : i64} {
  func.func @kernel(%arg0: i32, %arg1: memref<1x4x290xf32, #tpu.memory_space<vmem>>, %arg2: memref<8x36xf32, #tpu.memory_space<vmem>>, %arg3: memref<8x1xf32, #tpu.memory_space<vmem>>, %arg4: memref<8x8xf32, #tpu.memory_space<vmem>>, %arg5: memref<1x8xf32, #tpu.memory_space<vmem>>, %arg6: memref<8x8xf32, #tpu.memory_space<vmem>>, %arg7: memref<8x1xf32, #tpu.memory_space<vmem>>, %arg8: memref<1x8x256xf32, #tpu.memory_space<vmem>>) attributes {dimension_semantics = [#tpu.dimension_semantics<parallel>], iteration_bounds = array<i64: 2>, scalar_prefetch = 0 : i64, scratch_operands = 0 : i64, tpu.core_type = #tpu.core_type<tc>, window_params = [{transform_indices = @transform_0, window_bounds = array<i64: 1, 4, 290>}, {pipeline_mode = #tpu.pipeline_mode<synchronous>, transform_indices = @transform_1, window_bounds = array<i64: 8, 36>}, {pipeline_mode = #tpu.pipeline_mode<synchronous>, transform_indices = @transform_2, window_bounds = array<i64: 8, 1>}, {pipeline_mode = #tpu.pipeline_mode<synchronous>, transform_indices = @transform_3, window_bounds = array<i64: 8, 8>}, {pipeline_mode = #tpu.pipeline_mode<synchronous>, transform_indices = @transform_4, window_bounds = array<i64: 1, 8>}, {pipeline_mode = #tpu.pipeline_mode<synchronous>, transform_indices = @transform_5, window_bounds = array<i64: 8, 8>}, {pipeline_mode = #tpu.pipeline_mode<synchronous>, transform_indices = @transform_6, window_bounds = array<i64: 8, 1>}, {transform_indices = @transform_7, window_bounds = array<i64: 1, 8, 256>}]} {
    %c0 = arith.constant 0 : index
    %c0_0 = arith.constant 0 : index
    %c0_1 = arith.constant 0 : index
    %0 = vector.load %arg1[%c0, %c0_0, %c0_1] : memref<1x4x290xf32, #tpu.memory_space<vmem>>, vector<1x4x290xf32>
    %1 = vector.shape_cast %0 : vector<1x4x290xf32> to vector<4x290xf32>
    %2 = tpu.iota {dimensions = array<i32: 1>} : vector<1x256xi32>
    %c16_i32 = arith.constant 16 : i32
    %c0_i32 = arith.constant 0 : i32
    %3 = arith.cmpi eq, %c16_i32, %c0_i32 : i32
    %c1_i32 = arith.constant 1 : i32
    %4 = arith.select %3, %c1_i32, %c16_i32 : i32
    %5 = vector.broadcast %4 : i32 to vector<1x256xi32>
    %6 = arith.remsi %2, %5 : vector<1x256xi32>
    %c0_i32_2 = arith.constant 0 : i32
    %7 = vector.broadcast %c0_i32_2 : i32 to vector<1x256xi32>
    %8 = arith.cmpi ne, %6, %7 : vector<1x256xi32>
    %c0_i32_3 = arith.constant 0 : i32
    %9 = vector.broadcast %c0_i32_3 : i32 to vector<1x256xi32>
    %10 = arith.cmpi slt, %6, %9 : vector<1x256xi32>
    %c0_i32_4 = arith.constant 0 : i32
    %11 = arith.cmpi slt, %4, %c0_i32_4 : i32
    %12 = vector.broadcast %11 : i1 to vector<1x256xi1>
    %13 = vector.broadcast %12 : vector<1x256xi1> to vector<1x256xi1>
    %14 = arith.xori %10, %13 : vector<1x256xi1>
    %15 = arith.andi %14, %8 : vector<1x256xi1>
    %16 = vector.broadcast %4 : i32 to vector<1x256xi32>
    %17 = arith.addi %6, %16 : vector<1x256xi32>
    %18 = arith.select %15, %17, %6 : vector<1x256xi1>, vector<1x256xi32>
    %c0_i32_5 = arith.constant 0 : i32
    %19 = vector.broadcast %c0_i32_5 : i32 to vector<1x256xi32>
    %20 = arith.cmpi eq, %18, %19 : vector<1x256xi32>
    %c15_i32 = arith.constant 15 : i32
    %21 = vector.broadcast %c15_i32 : i32 to vector<1x256xi32>
    %22 = arith.cmpi eq, %18, %21 : vector<1x256xi32>
    %23 = vector.extract_strided_slice %1 {offsets = [0, 0], sizes = [4, 256], strides = [1, 1]} : vector<4x290xf32> to vector<4x256xf32>
    %cst = arith.constant 0.000000e+00 : f32
    %24 = vector.shape_cast %20 : vector<1x256xi1> to vector<1x256xi1>
    %25 = vector.broadcast %24 : vector<1x256xi1> to vector<4x256xi1>
    %26 = vector.broadcast %cst : f32 to vector<4x256xf32>
    %27 = arith.select %25, %26, %23 : vector<4x256xi1>, vector<4x256xf32>
    %28 = vector.extract_strided_slice %1 {offsets = [0, 1], sizes = [4, 256], strides = [1, 1]} : vector<4x290xf32> to vector<4x256xf32>
    %29 = vector.extract_strided_slice %1 {offsets = [0, 2], sizes = [4, 256], strides = [1, 1]} : vector<4x290xf32> to vector<4x256xf32>
    %cst_6 = arith.constant 0.000000e+00 : f32
    %30 = vector.shape_cast %22 : vector<1x256xi1> to vector<1x256xi1>
    %31 = vector.broadcast %30 : vector<1x256xi1> to vector<4x256xi1>
    %32 = vector.broadcast %cst_6 : f32 to vector<4x256xf32>
    %33 = arith.select %31, %32, %29 : vector<4x256xi1>, vector<4x256xf32>
    %34 = vector.extract_strided_slice %1 {offsets = [0, 16], sizes = [4, 256], strides = [1, 1]} : vector<4x290xf32> to vector<4x256xf32>
    %cst_7 = arith.constant 0.000000e+00 : f32
    %35 = vector.shape_cast %20 : vector<1x256xi1> to vector<1x256xi1>
    %36 = vector.broadcast %35 : vector<1x256xi1> to vector<4x256xi1>
    %37 = vector.broadcast %cst_7 : f32 to vector<4x256xf32>
    %38 = arith.select %36, %37, %34 : vector<4x256xi1>, vector<4x256xf32>
    %39 = vector.extract_strided_slice %1 {offsets = [0, 17], sizes = [4, 256], strides = [1, 1]} : vector<4x290xf32> to vector<4x256xf32>
    %40 = vector.extract_strided_slice %1 {offsets = [0, 18], sizes = [4, 256], strides = [1, 1]} : vector<4x290xf32> to vector<4x256xf32>
    %cst_8 = arith.constant 0.000000e+00 : f32
    %41 = vector.shape_cast %22 : vector<1x256xi1> to vector<1x256xi1>
    %42 = vector.broadcast %41 : vector<1x256xi1> to vector<4x256xi1>
    %43 = vector.broadcast %cst_8 : f32 to vector<4x256xf32>
    %44 = arith.select %42, %43, %40 : vector<4x256xi1>, vector<4x256xf32>
    %45 = vector.extract_strided_slice %1 {offsets = [0, 32], sizes = [4, 256], strides = [1, 1]} : vector<4x290xf32> to vector<4x256xf32>
    %cst_9 = arith.constant 0.000000e+00 : f32
    %46 = vector.shape_cast %20 : vector<1x256xi1> to vector<1x256xi1>
    %47 = vector.broadcast %46 : vector<1x256xi1> to vector<4x256xi1>
    %48 = vector.broadcast %cst_9 : f32 to vector<4x256xf32>
    %49 = arith.select %47, %48, %45 : vector<4x256xi1>, vector<4x256xf32>
    %50 = vector.extract_strided_slice %1 {offsets = [0, 33], sizes = [4, 256], strides = [1, 1]} : vector<4x290xf32> to vector<4x256xf32>
    %51 = vector.extract_strided_slice %1 {offsets = [0, 34], sizes = [4, 256], strides = [1, 1]} : vector<4x290xf32> to vector<4x256xf32>
    %cst_10 = arith.constant 0.000000e+00 : f32
    %52 = vector.shape_cast %22 : vector<1x256xi1> to vector<1x256xi1>
    %53 = vector.broadcast %52 : vector<1x256xi1> to vector<4x256xi1>
    %54 = vector.broadcast %cst_10 : f32 to vector<4x256xf32>
    %55 = arith.select %53, %54, %51 : vector<4x256xi1>, vector<4x256xf32>
    %56 = tpu.concatenate %27, %28, %33, %38, %39, %44, %49, %50, %55 in 0 : vector<4x256xf32>, vector<4x256xf32>, vector<4x256xf32>, vector<4x256xf32>, vector<4x256xf32>, vector<4x256xf32>, vector<4x256xf32>, vector<4x256xf32>, vector<4x256xf32> -> vector<36x256xf32>
    %c0_11 = arith.constant 0 : index
    %c0_12 = arith.constant 0 : index
    %57 = vector.load %arg2[%c0_11, %c0_12] : memref<8x36xf32, #tpu.memory_space<vmem>>, vector<8x36xf32>
    %cst_13 = arith.constant dense<0.000000e+00> : vector<8x256xf32>
    %58 = tpu.matmul %57, %56, %cst_13 {dimension_numbers = #tpu.dot_dimension_numbers<[1], [0], [0], [1], [0, 0, 1, 1], [], []>} : vector<8x36xf32>, vector<36x256xf32>, vector<8x256xf32> -> vector<8x256xf32>
    %c0_14 = arith.constant 0 : index
    %c0_15 = arith.constant 0 : index
    %59 = vector.load %arg3[%c0_14, %c0_15] : memref<8x1xf32, #tpu.memory_space<vmem>>, vector<8x1xf32>
    %60 = vector.broadcast %59 : vector<8x1xf32> to vector<8x256xf32>
    %61 = arith.addf %58, %60 : vector<8x256xf32>
    %cst_16 = arith.constant 0.000000e+00 : f32
    %62 = vector.broadcast %cst_16 : f32 to vector<8x256xf32>
    %63 = arith.maximumf %61, %62 : vector<8x256xf32>
    %cst_17 = arith.constant dense<0.000000e+00> : vector<8xf32>
    %64 = vector.multi_reduction <add>, %63, %cst_17 [1] : vector<8x256xf32> to vector<8xf32>
    %65 = vector.shape_cast %64 : vector<8xf32> to vector<8x1xf32>
    %cst_18 = arith.constant 2.560000e+02 : f32
    %66 = vector.broadcast %cst_18 : f32 to vector<8x1xf32>
    %67 = arith.divf %65, %66 : vector<8x1xf32>
    %c0_19 = arith.constant 0 : index
    %c0_20 = arith.constant 0 : index
    %68 = vector.load %arg4[%c0_19, %c0_20] : memref<8x8xf32, #tpu.memory_space<vmem>>, vector<8x8xf32>
    %69 = vector.broadcast %67 : vector<8x1xf32> to vector<8x8xf32>
    %70 = arith.mulf %68, %69 : vector<8x8xf32>
    %cst_21 = arith.constant dense<0.000000e+00> : vector<8xf32>
    %71 = vector.multi_reduction <add>, %70, %cst_21 [0] : vector<8x8xf32> to vector<8xf32>
    %72 = vector.shape_cast %71 : vector<8xf32> to vector<1x8xf32>
    %c0_22 = arith.constant 0 : index
    %c0_23 = arith.constant 0 : index
    %73 = vector.load %arg5[%c0_22, %c0_23] : memref<1x8xf32, #tpu.memory_space<vmem>>, vector<1x8xf32>
    %74 = arith.addf %72, %73 : vector<1x8xf32>
    %cst_24 = arith.constant 0.000000e+00 : f32
    %75 = vector.broadcast %cst_24 : f32 to vector<1x8xf32>
    %76 = arith.maximumf %74, %75 : vector<1x8xf32>
    %c0_25 = arith.constant 0 : index
    %c0_26 = arith.constant 0 : index
    %77 = vector.load %arg6[%c0_25, %c0_26] : memref<8x8xf32, #tpu.memory_space<vmem>>, vector<8x8xf32>
    %78 = vector.broadcast %76 : vector<1x8xf32> to vector<8x8xf32>
    %79 = arith.mulf %77, %78 : vector<8x8xf32>
    %cst_27 = arith.constant dense<0.000000e+00> : vector<8xf32>
    %80 = vector.multi_reduction <add>, %79, %cst_27 [1] : vector<8x8xf32> to vector<8xf32>
    %81 = vector.shape_cast %80 : vector<8xf32> to vector<8x1xf32>
    %c0_28 = arith.constant 0 : index
    %c0_29 = arith.constant 0 : index
    %82 = vector.load %arg7[%c0_28, %c0_29] : memref<8x1xf32, #tpu.memory_space<vmem>>, vector<8x1xf32>
    %83 = arith.addf %81, %82 : vector<8x1xf32>
    %84 = arith.negf %83 : vector<8x1xf32>
    %85 = math.exp %84 : vector<8x1xf32>
    %cst_30 = arith.constant 1.000000e+00 : f32
    %86 = vector.broadcast %cst_30 : f32 to vector<8x1xf32>
    %87 = arith.addf %86, %85 : vector<8x1xf32>
    %88 = arith.divf %86, %87 : vector<8x1xf32>
    %89 = vector.broadcast %88 : vector<8x1xf32> to vector<8x256xf32>
    %90 = arith.mulf %63, %89 : vector<8x256xf32>
    %c0_31 = arith.constant 0 : index
    %c0_32 = arith.constant 0 : index
    %c0_33 = arith.constant 0 : index
    %91 = vector.load %arg8[%c0_31, %c0_32, %c0_33] : memref<1x8x256xf32, #tpu.memory_space<vmem>>, vector<1x8x256xf32>
    %92 = vector.shape_cast %91 : vector<1x8x256xf32> to vector<8x256xf32>
    %93 = vector.shape_cast %90 : vector<8x256xf32> to vector<1x8x256xf32>
    tpu.vector_store %arg8[%c0_31, %c0_32, %c0_33], %93 {strides = array<i32>} : memref<1x8x256xf32, #tpu.memory_space<vmem>>, vector<1x8x256xf32>,
    return
  }
  func.func @transform_0(%arg0: i32) -> (i32, i32, i32) {
    %c0_i32 = arith.constant 0 : i32
    %c0_i32_0 = arith.constant 0 : i32
    %c0_i32_1 = arith.constant 0 : i32
    return %arg0, %c0_i32, %c0_i32_0 : i32, i32, i32
  }
  func.func @transform_1(%arg0: i32) -> (i32, i32) {
    %c0_i32 = arith.constant 0 : i32
    %c0_i32_0 = arith.constant 0 : i32
    %c0_i32_1 = arith.constant 0 : i32
    return %c0_i32, %c0_i32_0 : i32, i32
  }
  func.func @transform_2(%arg0: i32) -> (i32, i32) {
    %c0_i32 = arith.constant 0 : i32
    %c0_i32_0 = arith.constant 0 : i32
    %c0_i32_1 = arith.constant 0 : i32
    return %c0_i32, %c0_i32_0 : i32, i32
  }
  func.func @transform_3(%arg0: i32) -> (i32, i32) {
    %c0_i32 = arith.constant 0 : i32
    %c0_i32_0 = arith.constant 0 : i32
    %c0_i32_1 = arith.constant 0 : i32
    return %c0_i32, %c0_i32_0 : i32, i32
  }
  func.func @transform_4(%arg0: i32) -> (i32, i32) {
    %c0_i32 = arith.constant 0 : i32
    %c0_i32_0 = arith.constant 0 : i32
    %c0_i32_1 = arith.constant 0 : i32
    return %c0_i32, %c0_i32_0 : i32, i32
  }
  func.func @transform_5(%arg0: i32) -> (i32, i32) {
    %c0_i32 = arith.constant 0 : i32
    %c0_i32_0 = arith.constant 0 : i32
    %c0_i32_1 = arith.constant 0 : i32
    return %c0_i32, %c0_i32_0 : i32, i32
  }
  func.func @transform_6(%arg0: i32) -> (i32, i32) {
    %c0_i32 = arith.constant 0 : i32
    %c0_i32_0 = arith.constant 0 : i32
    %c0_i32_1 = arith.constant 0 : i32
    return %c0_i32, %c0_i32_0 : i32, i32
  }
  func.func @transform_7(%arg0: i32) -> (i32, i32, i32) {
    %c0_i32 = arith.constant 0 : i32
    %c0_i32_0 = arith.constant 0 : i32
    %c0_i32_1 = arith.constant 0 : i32
    return %arg0, %c0_i32, %c0_i32_0 : i32, i32, i32
  }
}

</mosaic_0001>

<llo_original>
// kernel: attenconv_forward.1
$region0: #{attenconv_forward.1}
  #allocation0 [shape = 'u32[]', space=smem, size = 0x4, offset = 0x4, fixed_abs, tag = 'smem constant byte address 0x4 - core index']
  #allocation1 [shape = 'u32[144,128]{1,0:T(1,128)}', space=vmem, size = 0x12000, scoped, tag = 'internal scratch']
  %s0 = inlined_call_operand.vmem [shape: f32[2,4,290], index: 0, kind: input, shape index: {}]
  %s1 = inlined_call_operand.vmem [shape: f32[8,36], index: 1, kind: input, shape index: {}]
  %s2 = inlined_call_operand.vmem [shape: f32[8,1], index: 2, kind: input, shape index: {}]
  %s3 = inlined_call_operand.vmem [shape: f32[8,8], index: 3, kind: input, shape index: {}]
  %s4 = inlined_call_operand.vmem [shape: f32[1,8], index: 4, kind: input, shape index: {}]
  %s5 = inlined_call_operand.vmem [shape: f32[8,8], index: 5, kind: input, shape index: {}]
  %s6 = inlined_call_operand.vmem [shape: f32[8,1], index: 6, kind: input, shape index: {}]
  %s7 = inlined_call_operand.vmem [shape: f32[2,8,256], index: 7, kind: output, shape index: {}]
  %s8 = sld [smem:[#allocation0]]
  $region61: #{attenconv_forward.1} parent=0
    _
  %s10 = ssub.s32 1, %s8
  %s11 = scalar_select 0, %s10, %s8
  loop: start=0, step=1, limit=4
  $region2: #{attenconv_forward.1} parent=0 // loop_pre_header
    _
  $region3: #{attenconv_forward.1} parent=0 // loop_header
    %s13 = sphi 0, %s17
    %p14 = scmp.ge.s32.totalorder %s13, 4
    %s23 = sphi 0, %s25
    %s26 = sphi 0, %s23
    %s27 = sphi 0, %s26
    %s43 = sphi 0, %s27
    %s47 = sphi 0, %s47
    %s49 = sphi 0, %s47
    %s50 = sphi 0, %s49
    %s64 = sphi 0, %s50
    %s68 = sphi 0, %s68
    %s70 = sphi 0, %s68
    %s71 = sphi 0, %s70
    %s85 = sphi 0, %s71
    %s89 = sphi 0, %s89
    %s91 = sphi 0, %s89
    %s92 = sphi 0, %s91
    %s106 = sphi 0, %s92
    %s110 = sphi 0, %s110
    %s112 = sphi 0, %s110
    %s113 = sphi 0, %s112
    %s127 = sphi 0, %s113
    %s131 = sphi 0, %s131
    %s133 = sphi 0, %s131
    %s134 = sphi 0, %s133
    %s148 = sphi 0, %s134
    %s152 = sphi 0, %s152
    %s154 = sphi 0, %s152
    %s155 = sphi 0, %s154
    %s169 = sphi 0, %s155
    %s175 = sphi 0, %s177
    %s178 = sphi 0, %s175
    %s179 = sphi 0, %s178
    %s195 = sphi 0, %s179
  $region4: #{attenconv_forward.1} parent=0 // loop_header_branch
    %16 = sbr.rel (%p14) target = $region8
  $region5: #{attenconv_forward.1} parent=0 // loop_body
    %s18 = ssub.s32 %s13, 1
    %s19 = ssub.s32 %s13, 2
    %s20 = sadd.s32 %s13, 1
    %s21 = ssub.s32 %s13, %s20
    %p22 = scmp.eq.s32.totalorder %s21, 0
    %s24 = sadd.s32 %s23, 1
    %s25 = scalar_select %p22, %s23, %s24
    %p28 = pneg %p22
    %p29 = scmp.eq.s32.totalorder %s13, 1
    %p30 = por %p28, %p29
    %p31 = scmp.ne.s32.totalorder %s23, %s26
    %p32 = scmp.eq.s32.totalorder %s13, 0
    %p33 = por %p31, %p32
    %p34 = scmp.ne.s32.totalorder %s23, %s26
    %p35 = scmp.eq.s32.totalorder %s18, 1
    %p36 = por %p34, %p35
    %p37 = scmp.ne.s32.totalorder %s26, %s27
    %p38 = scmp.eq.s32.totalorder %s18, 0
    %p39 = por %p37, %p38
    %p40 = scmp.ne.s32.totalorder %s26, %s27
    %p41 = scmp.eq.s32.totalorder %s19, 1
    %p42 = por %p40, %p41
    %p44 = scmp.ne.s32.totalorder %s27, %s43
    %p45 = scmp.eq.s32.totalorder %s19, 0
    %p46 = por %p44, %p45
    %s48 = sadd.s32 %s47, 1
    %p51 = scmp.eq.s32.totalorder %s13, 1
    %p52 = scmp.ne.s32.totalorder %s47, %s49
    %p53 = scmp.eq.s32.totalorder %s13, 0
    %p54 = por %p52, %p53
    %p55 = scmp.ne.s32.totalorder %s47, %s49
    %p56 = scmp.eq.s32.totalorder %s18, 1
    %p57 = por %p55, %p56
    %p58 = scmp.ne.s32.totalorder %s49, %s50
    %p59 = scmp.eq.s32.totalorder %s18, 0
    %p60 = por %p58, %p59
    %p61 = scmp.ne.s32.totalorder %s49, %s50
    %p62 = scmp.eq.s32.totalorder %s19, 1
    %p63 = por %p61, %p62
    %p65 = scmp.ne.s32.totalorder %s50, %s64
    %p66 = scmp.eq.s32.totalorder %s19, 0
    %p67 = por %p65, %p66
    %s69 = sadd.s32 %s68, 1
    %p72 = scmp.eq.s32.totalorder %s13, 1
    %p73 = scmp.ne.s32.totalorder %s68, %s70
    %p74 = scmp.eq.s32.totalorder %s13, 0
    %p75 = por %p73, %p74
    %p76 = scmp.ne.s32.totalorder %s68, %s70
    %p77 = scmp.eq.s32.totalorder %s18, 1
    %p78 = por %p76, %p77
    %p79 = scmp.ne.s32.totalorder %s70, %s71
    %p80 = scmp.eq.s32.totalorder %s18, 0
    %p81 = por %p79, %p80
    %p82 = scmp.ne.s32.totalorder %s70, %s71
    %p83 = scmp.eq.s32.totalorder %s19, 1
    %p84 = por %p82, %p83
    %p86 = scmp.ne.s32.totalorder %s71, %s85
    %p87 = scmp.eq.s32.totalorder %s19, 0
    %p88 = por %p86, %p87
    %s90 = sadd.s32 %s89, 1
    %p93 = scmp.eq.s32.totalorder %s13, 1
    %p94 = scmp.ne.s32.totalorder %s89, %s91
    %p95 = scmp.eq.s32.totalorder %s13, 0
    %p96 = por %p94, %p95
    %p97 = scmp.ne.s32.totalorder %s89, %s91
    %p98 = scmp.eq.s32.totalorder %s18, 1
    %p99 = por %p97, %p98
    %p100 = scmp.ne.s32.totalorder %s91, %s92
    %p101 = scmp.eq.s32.totalorder %s18, 0
    %p102 = por %p100, %p101
    %p103 = scmp.ne.s32.totalorder %s91, %s92
    %p104 = scmp.eq.s32.totalorder %s19, 1
    %p105 = por %p103, %p104
    %p107 = scmp.ne.s32.totalorder %s92, %s106
    %p108 = scmp.eq.s32.totalorder %s19, 0
    %p109 = por %p107, %p108
    %s111 = sadd.s32 %s110, 1
    %p114 = scmp.eq.s32.totalorder %s13, 1
    %p115 = scmp.ne.s32.totalorder %s110, %s112
    %p116 = scmp.eq.s32.totalorder %s13, 0
    %p117 = por %p115, %p116
    %p118 = scmp.ne.s32.totalorder %s110, %s112
    %p119 = scmp.eq.s32.totalorder %s18, 1
    %p120 = por %p118, %p119
    %p121 = scmp.ne.s32.totalorder %s112, %s113
    %p122 = scmp.eq.s32.totalorder %s18, 0
    %p123 = por %p121, %p122
    %p124 = scmp.ne.s32.totalorder %s112, %s113
    %p125 = scmp.eq.s32.totalorder %s19, 1
    %p126 = por %p124, %p125
    %p128 = scmp.ne.s32.totalorder %s113, %s127
    %p129 = scmp.eq.s32.totalorder %s19, 0
    %p130 = por %p128, %p129
    %s132 = sadd.s32 %s131, 1
    %p135 = scmp.eq.s32.totalorder %s13, 1
    %p136 = scmp.ne.s32.totalorder %s131, %s133
    %p137 = scmp.eq.s32.totalorder %s13, 0
    %p138 = por %p136, %p137
    %p139 = scmp.ne.s32.totalorder %s131, %s133
    %p140 = scmp.eq.s32.totalorder %s18, 1
    %p141 = por %p139, %p140
    %p142 = scmp.ne.s32.totalorder %s133, %s134
    %p143 = scmp.eq.s32.totalorder %s18, 0
    %p144 = por %p142, %p143
    %p145 = scmp.ne.s32.totalorder %s133, %s134
    %p146 = scmp.eq.s32.totalorder %s19, 1
    %p147 = por %p145, %p146
    %p149 = scmp.ne.s32.totalorder %s134, %s148
    %p150 = scmp.eq.s32.totalorder %s19, 0
    %p151 = por %p149, %p150
    %s153 = sadd.s32 %s152, 1
    %p156 = scmp.eq.s32.totalorder %s13, 1
    %p157 = scmp.ne.s32.totalorder %s152, %s154
    %p158 = scmp.eq.s32.totalorder %s13, 0
    %p159 = por %p157, %p158
    %p160 = scmp.ne.s32.totalorder %s152, %s154
    %p161 = scmp.eq.s32.totalorder %s18, 1
    %p162 = por %p160, %p161
    %p163 = scmp.ne.s32.totalorder %s154, %s155
    %p164 = scmp.eq.s32.totalorder %s18, 0
    %p165 = por %p163, %p164
    %p166 = scmp.ne.s32.totalorder %s154, %s155
    %p167 = scmp.eq.s32.totalorder %s19, 1
    %p168 = por %p166, %p167
    %p170 = scmp.ne.s32.totalorder %s155, %s169
    %p171 = scmp.eq.s32.totalorder %s19, 0
    %p172 = por %p170, %p171
    %s173 = ssub.s32 %s13, %s20
    %p174 = scmp.eq.s32.totalorder %s173, 0
    %s176 = sadd.s32 %s175, 1
    %s177 = scalar_select %p174, %s175, %s176
    %p180 = pneg %p174
    %p181 = scmp.eq.s32.totalorder %s13, 1
    %p182 = por %p180, %p181
    %p183 = scmp.ne.s32.totalorder %s175, %s178
    %p184 = scmp.eq.s32.totalorder %s13, 0
    %p185 = por %p183, %p184
    %p186 = scmp.ne.s32.totalorder %s175, %s178
    %p187 = scmp.eq.s32.totalorder %s18, 1
    %p188 = por %p186, %p187
    %p189 = scmp.ne.s32.totalorder %s178, %s179
    %p190 = scmp.eq.s32.totalorder %s18, 0
    %p191 = por %p189, %p190
    %p192 = scmp.ne.s32.totalorder %s178, %s179
    %p193 = scmp.eq.s32.totalorder %s19, 1
    %p194 = por %p192, %p193
    %p196 = scmp.ne.s32.totalorder %s179, %s195
    %p197 = scmp.eq.s32.totalorder %s19, 0
    %p198 = por %p196, %p197
    %p199 = scmp.le.s32.totalorder 1, %s13
    %p200 = scmp.lt.s32.totalorder %s13, 3
    %p201 = pnand %p199, %p200
    %p202 = pneg %p201
    // Predicated region
    $region9: #{attenconv_forward.1} parent=5 // pred_check
      _
    $region10: #{attenconv_forward.1} parent=5 // pred_check_branch
      %204 = sbr.rel (%p201) target = $region12
    $region11: #{attenconv_forward.1} parent=5 // pred_region
      %s205 = ssub.s32 %s13, 1
      // Predicated region
      $region13: #{attenconv_forward.1} parent=11 // pred_check
        %p206 = pneg %p60
      $region14: #{attenconv_forward.1} parent=11 // pred_check_branch
        %208 = sbr.rel (%p206) target = $region16
      $region15: #{attenconv_forward.1} parent=11 // pred_region
        _
      $region16: #{attenconv_forward.1} parent=11 // pred_fallthru
        _
      // Predicated region
      $region17: #{attenconv_forward.1} parent=11 // pred_check
        %p209 = pneg %p81
      $region18: #{attenconv_forward.1} parent=11 // pred_check_branch
        %211 = sbr.rel (%p209) target = $region20
      $region19: #{attenconv_forward.1} parent=11 // pred_region
        _
      $region20: #{attenconv_forward.1} parent=11 // pred_fallthru
        _
      // Predicated region
      $region21: #{attenconv_forward.1} parent=11 // pred_check
        %p212 = pneg %p102
      $region22: #{attenconv_forward.1} parent=11 // pred_check_branch
        %214 = sbr.rel (%p212) target = $region24
      $region23: #{attenconv_forward.1} parent=11 // pred_region
        _
      $region24: #{attenconv_forward.1} parent=11 // pred_fallthru
        _
      // Predicated region
      $region25: #{attenconv_forward.1} parent=11 // pred_check
        %p215 = pneg %p123
      $region26: #{attenconv_forward.1} parent=11 // pred_check_branch
        %217 = sbr.rel (%p215) target = $region28
      $region27: #{attenconv_forward.1} parent=11 // pred_region
        _
      $region28: #{attenconv_forward.1} parent=11 // pred_fallthru
        _
      // Predicated region
      $region29: #{attenconv_forward.1} parent=11 // pred_check
        %p218 = pneg %p144
      $region30: #{attenconv_forward.1} parent=11 // pred_check_branch
        %220 = sbr.rel (%p218) target = $region32
      $region31: #{attenconv_forward.1} parent=11 // pred_region
        _
      $region32: #{attenconv_forward.1} parent=11 // pred_fallthru
        _
      // Predicated region
      $region33: #{attenconv_forward.1} parent=11 // pred_check
        %p221 = pneg %p165
      $region34: #{attenconv_forward.1} parent=11 // pred_check_branch
        %223 = sbr.rel (%p221) target = $region36
      $region35: #{attenconv_forward.1} parent=11 // pred_region
        _
      $region36: #{attenconv_forward.1} parent=11 // pred_fallthru
        _
    $region12: #{attenconv_forward.1} parent=5 // pred_fallthru
      _
    %p224 = scmp.lt.s32.totalorder %s13, 2
    // Predicated region
    $region37: #{attenconv_forward.1} parent=5 // pred_check
      %p225 = pneg %p224
    $region38: #{attenconv_forward.1} parent=5 // pred_check_branch
      %227 = sbr.rel (%p225) target = $region40
    $region39: #{attenconv_forward.1} parent=5 // pred_region
      // Predicated region
      $region41: #{attenconv_forward.1} parent=39 // pred_check
        %p228 = pneg %p33
      $region42: #{attenconv_forward.1} parent=39 // pred_check_branch
        %230 = sbr.rel (%p228) target = $region44
      $region43: #{attenconv_forward.1} parent=39 // pred_region
        %p231 = scmp.lt.s32.totalorder %s13, 1
        %s232 = scalar_select %p231, %s13, 1
        %s233 = smul.addr %s232, 3
        %s234 = smul.addr %s233, 4
        %s235 = scalar_lea.vmem %s0, %s234
      $region44: #{attenconv_forward.1} parent=39 // pred_fallthru
        _
    $region40: #{attenconv_forward.1} parent=5 // pred_fallthru
      _
    %p236 = scmp.le.s32.totalorder 1, %s13
    %p237 = scmp.lt.s32.totalorder %s13, 3
    %p238 = pnand %p236, %p237
    %p239 = pneg %p238
    // Predicated region
    $region45: #{attenconv_forward.1} parent=5 // pred_check
      _
    $region46: #{attenconv_forward.1} parent=5 // pred_check_branch
      %241 = sbr.rel (%p238) target = $region48
    $region47: #{attenconv_forward.1} parent=5 // pred_region
      %s242 = ssub.s32 %s13, 1
      %p243 = scmp.lt.s32.totalorder %s18, 1
      %s244 = scalar_select %p243, %s18, 1
      %s245 = smul.addr %s244, 3
      %s246 = smul.addr %s245, 4
      %s247 = scalar_lea.vmem %s0, %s246
      %p248 = pneg %p39
      %p249 = pneg %p36
      %p250 = pneg %p60
      %p251 = pneg %p57
      %p252 = pneg %p81
      %p253 = pneg %p78
      %p254 = pneg %p102
      %p255 = pneg %p99
      %p256 = pneg %p123
      %p257 = pneg %p120
      %p258 = pneg %p144
      %p259 = pneg %p141
      %p260 = pneg %p165
      %p261 = pneg %p162
      %p262 = pneg %p191
      %p263 = pneg %p188
      %p264 = scmp.lt.s32.totalorder %s18, 1
      %s265 = scalar_select %p264, %s18, 1
      %s266 = smul.addr %s265, 2
      %s267 = smul.addr %s266, 8
      %s268 = scalar_lea.vmem %s7, %s267
      %p269 = scmp.lt.s32.totalorder %s18, 1
      %s270 = scalar_select %p269, %s18, 1
      %s271 = smul.addr %s270, 3
      %s272 = smul.addr %s271, 4
      %s273 = scalar_lea.vmem %s0, %s272
      %p274 = scmp.lt.s32.totalorder %s18, 1
      %s275 = scalar_select %p274, %s18, 1
      %s276 = smul.addr %s275, 2
      %s277 = smul.addr %s276, 8
      %s278 = scalar_lea.vmem %s7, %s277
      %v279 = vld [vmem:[%s273] sm:$0xff]
      %v280 = vld [vmem:[%s273 + $0x8] sm:$0xf]
      %v281 = vlaneseq
      %v282 = vand.u32 %v281, 127
      %v283 = vadd.s32 %v282, 128
      %vm284 = vcmp.lt.s32.totalorder %v282, 0
      %v285 = vsub.s32 0, %v282
      %v286 = vsel %vm284, %v285, %v282
      %v287 = vshrl.u32 %v286, 4
      %v288 = vand.u32 %v286, 15
      %v289 = vsub.s32 0, %v288
      %v290 = vsel %vm284, %v289, %v288
      %vm291 = vcmp.lt.s32.totalorder %v283, 0
      %v292 = vsub.s32 0, %v283
      %v293 = vsel %vm291, %v292, %v283
      %v294 = vshrl.u32 %v293, 4
      %v295 = vand.u32 %v293, 15
      %v296 = vsub.s32 0, %v295
      %v297 = vsel %vm291, %v296, %v295
      %vm298 = vcmp.ne.s32.totalorder %v290, 0
      %vm299 = vcmp.ne.s32.totalorder %v297, 0
      %vm300 = vcmp.lt.s32.totalorder %v290, 0
      %vm301 = vcmp.lt.s32.totalorder %v297, 0
      %vm302 = vmand %vm300, %vm298
      %vm303 = vmand %vm301, %vm299
      %v304 = vadd.s32 %v290, 16
      %v305 = vadd.s32 %v297, 16
      %v306 = vsel %vm302, %v304, %v290
      %v307 = vsel %vm303, %v305, %v297
      %vm308 = vcmp.eq.s32.totalorder %v306, 0
      %vm309 = vcmp.eq.s32.totalorder %v307, 0
      %vm310 = vcmp.eq.s32.totalorder %v306, 15
      %vm311 = vcmp.eq.s32.totalorder %v307, 15
      %v312 = vsel %vm308, 1, 0
      %v313 = vsel %vm309, 1, 0
      %vm314 = vcmp.eq.s32.totalorder %v312, 1
      %vm315 = vcmp.eq.s32.totalorder %v313, 1
      %v317 = vcombine.high %v279, %v279
      %v319 = vsel %vm314, 0.0, %v279
      %v320 = vsel %vm315, 0.0, %v317
      %v321 = vsel %vm310, 1, 0
      %v322 = vsel %vm311, 1, 0
      %vm323 = vcmp.eq.s32.totalorder %v321, 1
      %vm324 = vcmp.eq.s32.totalorder %v322, 1
      %326 = vrot.lane.b32.xlu0 %v279, 126
      %v327 = vpop.permute.xlu0 %326
      %328 = vrot.lane.b32.xlu0 %v317, 126
      %v329 = vpop.permute.xlu0 %328
      %330 = vrot.lane.b32.xlu0 %v280, 126
      %v331 = vpop.permute.xlu0 %330
      %vm332 = vcmask 1031168
      %v333 = vsel %vm332, %v327, %v329
      %v334 = vsel %vm332, %v329, %v331
      %v337 = vsel %vm323, 0.0, %v333
      %v338 = vsel %vm324, 0.0, %v334
      %339 = vrot.lane.b32.xlu0 %v279, 112
      %v340 = vpop.permute.xlu0 %339
      %341 = vrot.lane.b32.xlu0 %v317, 112
      %v342 = vpop.permute.xlu0 %341
      %343 = vrot.lane.b32.xlu0 %v280, 112
      %v344 = vpop.permute.xlu0 %343
      %vm345 = vcmask 916480
      %v346 = vsel %vm345, %v340, %v342
      %v347 = vsel %vm345, %v342, %v344
      %v350 = vsel %vm314, 0.0, %v346
      %v351 = vsel %vm315, 0.0, %v347
      %352 = vrot.lane.b32.xlu0 %v279, 110
      %v353 = vpop.permute.xlu0 %352
      %354 = vrot.lane.b32.xlu0 %v317, 110
      %v355 = vpop.permute.xlu0 %354
      %356 = vrot.lane.b32.xlu0 %v280, 110
      %v357 = vpop.permute.xlu0 %356
      %vm358 = vcmask 900096
      %v359 = vsel %vm358, %v353, %v355
      %v360 = vsel %vm358, %v355, %v357
      %v363 = vsel %vm323, 0.0, %v359
      %v364 = vsel %vm324, 0.0, %v360
      %365 = vrot.lane.b32.xlu0 %v279, 96
      %v366 = vpop.permute.xlu0 %365
      %367 = vrot.lane.b32.xlu0 %v317, 96
      %v368 = vpop.permute.xlu0 %367
      %369 = vrot.lane.b32.xlu0 %v280, 96
      %v370 = vpop.permute.xlu0 %369
      %vm371 = vcmask 785408
      %v372 = vsel %vm371, %v366, %v368
      %v373 = vsel %vm371, %v368, %v370
      %v376 = vsel %vm314, 0.0, %v372
      %v377 = vsel %vm315, 0.0, %v373
      %378 = vrot.lane.b32.xlu0 %v279, 94
      %v379 = vpop.permute.xlu0 %378
      %380 = vrot.lane.b32.xlu0 %v317, 94
      %v381 = vpop.permute.xlu0 %380
      %382 = vrot.lane.b32.xlu0 %v280, 94
      %v383 = vpop.permute.xlu0 %382
      %vm384 = vcmask 769024
      %v385 = vsel %vm384, %v379, %v381
      %v386 = vsel %vm384, %v381, %v383
      %v389 = vsel %vm323, 0.0, %v385
      %v390 = vsel %vm324, 0.0, %v386
      %v391 = vcombine.low %v279, %v279
      %v392 = vcombine.low %v280, %v280
      %393 = vrot.lane.b32.xlu0 %v391, 127
      %v394 = vpop.permute.xlu0 %393
      %395 = vrot.lane.b32.xlu0 %v279, 127
      %v396 = vpop.permute.xlu0 %395
      %397 = vrot.lane.b32.xlu0 %v392, 127
      %v398 = vpop.permute.xlu0 %397
      %vm399 = vcmask 1039360
      %v400 = vsel %vm399, %v394, %v396
      %v401 = vsel %vm399, %v396, %v398
      %v406 = vrot.slane %v350, 4
      %v407 = vrot.slane %v351, 4
      %410 = vrot.lane.b32.xlu0 %v279, 111
      %v411 = vpop.permute.xlu0 %410
      %412 = vrot.lane.b32.xlu0 %v317, 111
      %v413 = vpop.permute.xlu0 %412
      %414 = vrot.lane.b32.xlu0 %v280, 111
      %v415 = vpop.permute.xlu0 %414
      %vm416 = vcmask 908288
      %v417 = vsel %vm416, %v411, %v413
      %v418 = vsel %vm416, %v413, %v415
      %v423 = vrot.slane %v363, 4
      %v424 = vrot.slane %v364, 4
      %427 = vrot.lane.b32.xlu0 %v391, 95
      %v428 = vpop.permute.xlu0 %427
      %429 = vrot.lane.b32.xlu0 %v279, 95
      %v430 = vpop.permute.xlu0 %429
      %431 = vrot.lane.b32.xlu0 %v392, 95
      %v432 = vpop.permute.xlu0 %431
      %vm433 = vcmask 777216
      %v434 = vsel %vm433, %v428, %v430
      %v435 = vsel %vm433, %v430, %v432
      %vm438 = vcmask 1043456
      %v439 = vsel %vm438, %v319, %v400
      %v440 = vsel %vm438, %v320, %v401
      %v441 = vsel %vm438, %v337, %v406
      %v442 = vsel %vm438, %v338, %v407
      %v443 = vsel %vm438, %v417, %v423
      %v444 = vsel %vm438, %v418, %v424
      %v445 = vsel %vm438, %v376, %v434
      %v446 = vsel %vm438, %v377, %v435
      %v447 = vld [vmem:[%s1] sm:$0xff]
      %v448 = vld [vmem:[%s2] sm:$0xff]
      %450 = vset.pattern.permute.xlu0 0
      %451 = vperm.xlu0 %450, %v448
      %v452 = vpop.permute.xlu0 %451
      %vm454 = vcmask 293888
      %v456 = vsel %vm454, %v447, 0
      %v459 = vsel %vm438, %v389, 0
      %v462 = vsel %vm438, %v390, 0
      %464 = vmatprep.subr.mxu0 %v440
      %465 = vmatpush1.msra.mxu0 %v439
      %466 = vmatprep.subr.mxu0 %v442
      %467 = vmatpush1.msra.mxu0 %v441
      %468 = vmatprep.subr.mxu0 %v444
      %469 = vmatpush1.msra.mxu0 %v443
      %470 = vmatprep.subr.mxu0 %v446
      %471 = vmatpush1.msra.mxu0 %v445
      %472 = vmatprep.subr.mxu0 %v462
      %473 = vmatpush1.msra.mxu0 %v459
      %474 = vmatprep.subr.mxu0 0.0
      %475 = vmatpush1.msra.mxu0 0.0
      %476 = vmatprep.subr.mxu0 0.0
      %477 = vmatpush1.msra.mxu0 0.0
      %478 = vmatprep.subr.mxu0 0.0
      %479 = vmatpush1.msra.mxu0 0.0
      %480 = vmatprep.subr.mxu0 0.0
      %481 = vmatpush1.msra.mxu0 0.0
      %482 = vmatprep.subr.mxu0 0.0
      %483 = vmatpush1.msra.mxu0 0.0
      %484 = vmatprep.subr.mxu0 0.0
      %485 = vmatpush1.msra.mxu0 0.0
      %486 = vmatprep.subr.mxu0 0.0
      %487 = vmatpush1.msra.mxu0 0.0
      %488 = vmatprep.subr.mxu0 0.0
      %489 = vmatpush1.msra.mxu0 0.0
      %490 = vmatprep.subr.mxu0 0.0
      %491 = vmatpush1.msra.mxu0 0.0
      %492 = vmatprep.subr.mxu0 0.0
      %493 = vmatpush1.msra.mxu0 0.0
      %494 = vmatprep.subr.mxu0 0.0
      %495 = vmatpush1.msra.mxu0 0.0
      %496 = vmatprep.subr.mxu0 0.0
      %497 = vmatpush1.msra.mxu0 0.0
      %498 = vmatprep.subr.mxu0 0.0
      %499 = vmatpush1.msra.mxu0 0.0
      %500 = vmatprep.subr.mxu0 0.0
      %501 = vmatpush1.msra.mxu0 0.0
      %502 = vmatprep.subr.mxu0 0.0
      %503 = vmatpush1.msra.mxu0 0.0
      %504 = vmatprep.subr.mxu0 0.0
      %505 = vmatpush1.msra.mxu0 0.0
      %506 = vmatprep.subr.mxu0 0.0
      %507 = vmatpush1.msra.mxu0 0.0
      %508 = vmatprep.subr.mxu0 0.0
      %509 = vmatpush1.msra.mxu0 0.0
      %510 = vmatprep.subr.mxu0 0.0
      %511 = vmatpush1.msra.mxu0 0.0
      %512 = vmatprep.subr.mxu0 0.0
      %513 = vmatpush1.msra.mxu0 0.0
      %514 = vmatprep.subr.mxu0 0.0
      %515 = vmatpush1.msra.mxu0 0.0
      %516 = vmatprep.subr.mxu0 0.0
      %517 = vmatpush1.msra.mxu0 0.0
      %518 = vmatprep.subr.mxu0 0.0
      %519 = vmatpush1.msra.mxu0 0.0
      %520 = vmatprep.subr.mxu0 0.0
      %521 = vmatpush1.msra.mxu0 0.0
      %522 = vmatprep.subr.mxu0 0.0
      %523 = vmatpush1.msra.mxu0 0.0
      %524 = vmatprep.subr.mxu0 0.0
      %525 = vmatpush1.msra.mxu0 0.0
      %526 = vmatprep.subr.mxu0 0.0
      %527 = vmatpush1.msra.mxu0 0.0
      %528 = vmatprep.mubr.f32.mxu0 0.0
      %529 = vmatmul.mubr.f32.gmra.mrb[0].mxu0 %v456
      %v530 = vpop.f32.mrb[0].mxu0
      %v531 = vadd.f32 %v452, %v530
      %v532 = vpop.f32.mrb[0].mxu0
      %v533 = vadd.f32 %v452, %v532
      %534 = vdwg.mxu0
      %v535 = vmax.f32 %v531, 0.0
      %v536 = vmax.f32 %v533, 0.0
      %v537 = vadd.f32 %v535, %v536
      %538 = vadd.xlane.f32.xlu0 %v537
      %v539 = vpop.xlane.xlu0 %538
      %v540 = vrcp.pop 256.0
      %v541 = vmul.f32 %v539, %v540
      %v542 = vld [vmem:[%s3] sm:$0xff]
      %v543 = vmul.f32 %v542, %v541
      %vm544 = vcmask 64512
      %v545 = vsel %vm544, %v543, 0.0
      %v546 = vrot.slane %v545, 4
      %v547 = vadd.f32 %v545, %v546
      %v548 = vrot.slane %v547, 2
      %v549 = vadd.f32 %v547, %v548
      %v550 = vrot.slane %v549, 1
      %v551 = vadd.f32 %v549, %v550
      %v552 = vld [vmem:[%s4] sm:$0x1]
      %v553 = vadd.f32 %v551, %v552
      %v554 = vmax.f32 %v553, 0.0
      %v555 = vld [vmem:[%s5] sm:$0xff]
      %v556 = vlaneseq
      %v557 = vshrl.u32 %v556, 7
      %v558 = vsub.s32 0, %v557
      %v559 = vrot.slane %v554, %v558
      %v560 = vmul.f32 %v555, %v559
      %v561 = vsel %vm544, %v560, 0.0
      %562 = vadd.xlane.f32.xlu0 %v561
      %v563 = vpop.xlane.xlu0 %562
      %v564 = vld [vmem:[%s6] sm:$0xff]
      %v565 = vadd.f32 %v563, %v564
      %v566 = vxor.u32 %v565, 2147483648
      %v567 = vmul.f32 %v566, 1.442695
      %v568 = vpow.pop %v567
      %v569 = vadd.f32 %v568, 1.0
      %v570 = vrcp.pop %v569
      %v571 = vmul.f32 1.0, %v570
      %573 = vset.pattern.permute.xlu0 0
      %574 = vperm.xlu0 %573, %v571
      %v575 = vpop.permute.xlu0 %574
      %v577 = vmul.f32 %v535, %v575
      %v578 = vmul.f32 %v536, %v575
      %579 = vst [vmem:[%s278] sm:$0xff] %v577
      %580 = vst [vmem:[%s278 + $0x8] sm:$0xff] %v578
      %p581 = scmp.lt.s32.totalorder %s18, 1
      %s582 = scalar_select %p581, %s18, 1
      %s583 = smul.addr %s582, 2
      %s584 = smul.addr %s583, 8
      %s585 = scalar_lea.vmem %s7, %s584
      // Predicated region
      $region49: #{attenconv_forward.1} parent=47 // pred_check
        %p586 = pneg %p188
      $region50: #{attenconv_forward.1} parent=47 // pred_check_branch
        %588 = sbr.rel (%p586) target = $region52
      $region51: #{attenconv_forward.1} parent=47 // pred_region
        _
      $region52: #{attenconv_forward.1} parent=47 // pred_fallthru
        _
    $region48: #{attenconv_forward.1} parent=5 // pred_fallthru
      _
    %p589 = scmp.le.s32.totalorder 2, %s13
    // Predicated region
    $region53: #{attenconv_forward.1} parent=5 // pred_check
      %p590 = pneg %p589
    $region54: #{attenconv_forward.1} parent=5 // pred_check_branch
      %592 = sbr.rel (%p590) target = $region56
    $region55: #{attenconv_forward.1} parent=5 // pred_region
      %s593 = ssub.s32 %s13, 2
      // Predicated region
      $region57: #{attenconv_forward.1} parent=55 // pred_check
        %p594 = pneg %p194
      $region58: #{attenconv_forward.1} parent=55 // pred_check_branch
        %596 = sbr.rel (%p594) target = $region60
      $region59: #{attenconv_forward.1} parent=55 // pred_region
        %p597 = scmp.lt.s32.totalorder %s19, 1
        %s598 = scalar_select %p597, %s19, 1
        %s599 = smul.addr %s598, 2
        %s600 = smul.addr %s599, 8
        %s601 = scalar_lea.vmem %s7, %s600
      $region60: #{attenconv_forward.1} parent=55 // pred_fallthru
        _
    $region56: #{attenconv_forward.1} parent=5 // pred_fallthru
      _
  $region6: #{attenconv_forward.1} parent=0 // loop_footer
    %s17 = sadd.s32 1, %s13
  $region7: #{attenconv_forward.1} parent=0 // loop_footer_branch
    %12 = sbr.rel target = $region3
  $region8: #{attenconv_forward.1} parent=0 // loop_exit
    _

</llo_original>
